<compile_context>
chip_gen: v5e
topology: v5e:2x2
jax: 0.10.0
libtpu: 0.0.40
codegen_flags: <defaults>
</compile_context>

<pallas_src>
import functools
import math

import jax
import jax.numpy as jnp
from jax.experimental import pallas as pl
from jax.experimental.pallas import tpu as pltpu

EPS = 1e-6


def _round_up(v, m):
    return ((v + m - 1) // m) * m


def _vmem_budget_bytes():
    """~75% of physical VMEM (leaves compiler scratch / semaphore headroom)."""
    cap = 64 << 20  # conservative fallback (v7x per-core VMEM)
    try:
        info = pltpu.get_tpu_info()
        cap = int(getattr(info, "vmem_capacity_bytes", cap) or cap)
    except Exception:
        pass
    return (cap * 3) // 4


def pack_params(a2, b2, w, bias):
    """Fold the LayerNorm affine into the linear layer and pad to a
    lane-aligned bf16 layout.  Call ONCE, outside the per-step hot path:
        a_2*xn @ W + (b_2 @ W + bias)  ==  affine-LayerNorm followed by Linear.
    Returns (w_packed [Dp, Dp] bf16, bias_packed [1, Dp] f32)."""
    d = w.shape[0]
    d_pad = _round_up(d, 128)
    a2 = a2.astype(jnp.float32)
    b2 = b2.astype(jnp.float32)
    w = w.astype(jnp.float32)
    bias = bias.astype(jnp.float32)
    w_fold = (a2[:, None] * w).astype(jnp.bfloat16)   # diag(a_2) @ W
    bias_fold = bias + b2 @ w                         # b_2 @ W + bias
    if d_pad == d:
        return w_fold, bias_fold.reshape(1, d)
    w_p = jnp.zeros((d_pad, d_pad), jnp.bfloat16).at[:d, :d].set(w_fold)
    b_p = jnp.zeros((1, d_pad), jnp.float32).at[0, :d].set(bias_fold)
    return w_p, b_p


def _sublayer_connection_kernel(x_ref, w_ref, bias_ref, o_ref, *, d_real):
    # x_ref:    (rt, Dp) f32   (block-invariant across the N grid axis)
    # w_ref:    (Dp, tn) bf16  (a_2 pre-folded)
    # bias_ref: (1,  tn) f32   (bias + b_2 @ W pre-folded)
    # o_ref:    (rt, tn) f32
    d_pad = x_ref.shape[-1]
    tn = o_ref.shape[-1]

    x = x_ref[...].astype(jnp.float32)

    # LayerNormP statistics (biased variance: the module uses unbiased=False).
    # Two-pass mean / centered variance: robust to large DC offsets.
    inv_d = jnp.float32(1.0 / d_real)
    mean = jnp.sum(x, axis=-1, keepdims=True) * inv_d
    xc = x - mean
    if d_real != d_pad:
        # zero the feature-padding columns so they don't perturb the variance
        col = jax.lax.broadcasted_iota(jnp.int32, xc.shape, dimension=1)
        xc = jnp.where(col < d_real, xc, 0.0)
    var = jnp.sum(xc * xc, axis=-1, keepdims=True) * inv_d
    inv = pl.reciprocal(jnp.sqrt(var) + EPS, approx=True)   # EUP slot

    # sublayer(norm(x)): position-wise linear, bf16 MXU operands, f32 accum.
    y = (xc * inv).astype(jnp.bfloat16)
    z = jnp.dot(y, w_ref[...], preferred_element_type=jnp.float32) + bias_ref[...]

    # dropout (eval mode -> identity) + residual add in f32.  Fresh, narrow
    # re-load of this N tile's x columns keeps x's live range short.
    col0 = pl.program_id(1) * tn
    if tn % 128 == 0:
        col0 = pl.multiple_of(col0, 128)
    x_res = x_ref[:, pl.ds(col0, tn)]
    o_ref[...] = (x_res + z).astype(o_ref.dtype)


def sublayer_connection_packed(x, w_packed, bias_packed, *,
                               row_tile=512, n_tile=None):
    """x: [..., D] float32, weights from pack_params.
    Returns x + Linear(LayerNorm(x)) (dropout in eval mode)."""
    d_real = x.shape[-1]
    d_pad = w_packed.shape[-1]
    rows = int(math.prod(x.shape[:-1]))

    budget = _vmem_budget_bytes()

    # --- N (output-column) tiling: only when the resident bf16 weight would
    # not comfortably fit the VMEM budget (large D / v7x). ---
    if n_tile is None:
        if d_pad * d_pad * 2 <= budget // 2:
            n_tile = d_pad
        else:
            n_tile = d_pad
            for cand in (1024, 512, 256, 128):
                if d_pad % cand == 0 and 2 * d_pad * cand * 2 <= budget // 2:
                    n_tile = cand
                    break
    assert d_pad % n_tile == 0
    n_col_tiles = d_pad // n_tile
    w_buffers = 1 if n_col_tiles == 1 else 2   # invariant weight: 1 buffer

    # --- row tile: biggest multiple of 8 that fits the budget, but at least
    # 2 grid steps so the "parallel" axis can shard across v7x's two TCs. ---
    rows8 = max(8, _round_up(rows, 8))
    rt = _round_up(min(row_tile, rows8), 8)
    if rows8 >= 16 and rt >= rows8:
        rt = _round_up((rows8 + 1) // 2, 8)
    fixed = d_pad * n_tile * 2 * w_buffers + 2 * n_tile * 4 * w_buffers
    while rt > 8 and fixed + 2 * rt * (d_pad + n_tile) * 4 > budget:
        rt = max(8, _round_up(rt // 2, 8))
    n_row_tiles = pl.cdiv(rows, rt)

    # --- activation layout: no pad/copy when D is already lane-aligned ---
    if d_real == d_pad:
        x2 = x.reshape(rows, d_real)                 # free, no extra HBM copy
    else:
        x2 = jnp.zeros((rows, d_pad), x.dtype).at[:, :d_real].set(
            x.reshape(rows, d_real))

    vmem_limit = int(min(budget,
                         max(fixed + 2 * rt * (d_pad + n_tile) * 4 + (4 << 20),
                             16 << 20)))

    cost = pl.CostEstimate(
        flops=2 * rows * d_real * d_real + 8 * rows * d_real,
        transcendentals=2 * rows,
        bytes_accessed=rows * d_real * 4 * 2
        + n_row_tiles * d_pad * d_pad * 2 + d_pad * 4,
    )

    invariant = pl.Buffered(1)
    kernel = functools.partial(_sublayer_connection_kernel, d_real=d_real)

    out = pl.pallas_call(
        kernel,
        out_shape=jax.ShapeDtypeStruct((rows, d_pad), x.dtype),
        grid_spec=pltpu.PrefetchScalarGridSpec(
            num_scalar_prefetch=0,
            grid=(n_row_tiles, n_col_tiles),
            in_specs=[
                # x row tile: invariant across N axis (DMA'd once per row tile)
                pl.BlockSpec((rt, d_pad), lambda i, j: (i, 0),
                             pipeline_mode=invariant if n_row_tiles == 1 else None),
                # weight: resident single-buffered when not N-tiled
                pl.BlockSpec((d_pad, n_tile), lambda i, j: (0, j),
                             pipeline_mode=invariant if n_col_tiles == 1 else None),
                # fused bias
                pl.BlockSpec((1, n_tile), lambda i, j: (0, j),
                             pipeline_mode=invariant if n_col_tiles == 1 else None),
            ],
            out_specs=pl.BlockSpec((rt, n_tile), lambda i, j: (i, j)),
        ),
        compiler_params=pltpu.CompilerParams(
            dimension_semantics=("parallel", "arbitrary"),
            vmem_limit_bytes=vmem_limit,
        ),
        cost_estimate=cost,
    )(x2, w_packed, bias_packed)

    out = out if d_real == d_pad else out[:, :d_real]
    return out.reshape(x.shape)


def sublayer_connection(x, a2, b2, w, bias, **kwargs):
    """One-shot convenience wrapper (packs weights per call).  For the real
    hot path pack once with pack_params() and call sublayer_connection_packed()."""
    w_p, b_p = pack_params(a2, b2, w, bias)
    return sublayer_connection_packed(x, w_p, b_p, **kwargs)


def reference(x, a2, b2, w, bias):
    mean = jnp.mean(x, axis=-1, keepdims=True)
    std = jnp.sqrt(jnp.mean((x - mean) ** 2, axis=-1, keepdims=True))
    y = a2 * (x - mean) / (std + EPS) + b2
    return x + jnp.einsum("...d,de->...e", y, w) + bias


if __name__ == "__main__":
    key = jax.random.PRNGKey(0)
    kx, ka, kb2, kw, kb = jax.random.split(key, 5)

    # Case 1: lane-aligned, pre-packed hot path.  batch=2, seq=16, hidden=128.
    B, S, D = 2, 16, 128
    x = jax.random.normal(kx, (B, S, D), dtype=jnp.float32)
    a2 = 1.0 + 0.1 * jax.random.normal(ka, (D,), dtype=jnp.float32)
    b2 = 0.1 * jax.random.normal(kb2, (D,), dtype=jnp.float32)
    w = 0.05 * jax.random.normal(kw, (D, D), dtype=jnp.float32)
    bias = 0.01 * jax.random.normal(kb, (D,), dtype=jnp.float32)

    w_p, b_p = pack_params(a2, b2, w, bias)        # hoisted out of the hot path
    out = jax.block_until_ready(sublayer_connection_packed(x, w_p, b_p))
    ref = reference(x, a2, b2, w, bias)
    assert out.shape == (B, S, D)
    # tolerance covers bf16 matmul operands, approx reciprocal, a_2/b_2 folding
    assert jnp.allclose(out, ref, atol=3e-2, rtol=3e-2), "mismatch (aligned)"

    # Case 2: unaligned feature dim (exercises feature padding + ragged rows).
    B2, S2, D2 = 2, 10, 96
    x_u = jax.random.normal(kx, (B2, S2, D2), dtype=jnp.float32)
    a2_u = 1.0 + 0.1 * jax.random.normal(ka, (D2,), dtype=jnp.float32)
    b2_u = 0.1 * jax.random.normal(kb2, (D2,), dtype=jnp.float32)
    w_u = 0.05 * jax.random.normal(kw, (D2, D2), dtype=jnp.float32)
    bias_u = 0.01 * jax.random.normal(kb, (D2,), dtype=jnp.float32)
    out_u = jax.block_until_ready(
        sublayer_connection(x_u, a2_u, b2_u, w_u, bias_u))
    ref_u = reference(x_u, a2_u, b2_u, w_u, bias_u)
    assert out_u.shape == (B2, S2, D2)
    assert jnp.allclose(out_u, ref_u, atol=3e-2, rtol=3e-2), "mismatch (padded)"

    # Case 3: explicitly exercise the N-tiled (large-D / v7x) path.
    B3, S3, D3 = 2, 24, 256
    x_n = jax.random.normal(kx, (B3, S3, D3), dtype=jnp.float32)
    a2_n = jnp.ones((D3,), dtype=jnp.float32)
    b2_n = jnp.zeros((D3,), dtype=jnp.float32)
    w_n = 0.05 * jax.random.normal(kw, (D3, D3), dtype=jnp.float32)
    bias_n = 0.01 * jax.random.normal(kb, (D3,), dtype=jnp.float32)
    out_n = jax.block_until_ready(
        sublayer_connection(x_n, a2_n, b2_n, w_n, bias_n, n_tile=128))
    ref_n = reference(x_n, a2_n, b2_n, w_n, bias_n)
    assert out_n.shape == (B3, S3, D3)
    assert jnp.allclose(out_n, ref_n, atol=3e-2, rtol=3e-2), "mismatch (N-tiled)"

    print("KERNEL_OK")
</pallas_src>

<mosaic_0001>
module attributes {stable_mosaic.version = 11 : i64} {
  func.func @_sublayer_connection_kernel(%arg0: i32, %arg1: i32, %arg2: memref<16x128xf32, #tpu.memory_space<vmem>>, %arg3: memref<128x128xbf16, #tpu.memory_space<vmem>>, %arg4: memref<1x128xf32, #tpu.memory_space<vmem>>, %arg5: memref<16x128xf32, #tpu.memory_space<vmem>>) attributes {dimension_semantics = [#tpu.dimension_semantics<parallel>, #tpu.dimension_semantics<arbitrary>], iteration_bounds = array<i64: 2, 1>, scalar_prefetch = 0 : i64, scratch_operands = 0 : i64, tpu.core_type = #tpu.core_type<tc>, window_params = [{transform_indices = @transform_0, window_bounds = array<i64: 16, 128>}, {pipeline_mode = #tpu.pipeline_mode<synchronous>, transform_indices = @transform_1, window_bounds = array<i64: 128, 128>}, {pipeline_mode = #tpu.pipeline_mode<synchronous>, transform_indices = @transform_2, window_bounds = array<i64: 1, 128>}, {transform_indices = @transform_3, window_bounds = array<i64: 16, 128>}]} {
    %c0 = arith.constant 0 : index
    %c0_0 = arith.constant 0 : index
    %0 = vector.load %arg2[%c0, %c0_0] : memref<16x128xf32, #tpu.memory_space<vmem>>, vector<16x128xf32>
    %cst = arith.constant dense<0.000000e+00> : vector<16xf32>
    %1 = vector.multi_reduction <add>, %0, %cst [1] : vector<16x128xf32> to vector<16xf32>
    %2 = vector.shape_cast %1 : vector<16xf32> to vector<16x1xf32>
    %cst_1 = arith.constant 7.812500e-03 : f32
    %3 = vector.broadcast %cst_1 : f32 to vector<16x1xf32>
    %4 = arith.mulf %2, %3 : vector<16x1xf32>
    %5 = vector.broadcast %4 : vector<16x1xf32> to vector<16x128xf32>
    %6 = arith.subf %0, %5 : vector<16x128xf32>
    %7 = arith.mulf %6, %6 : vector<16x128xf32>
    %cst_2 = arith.constant dense<0.000000e+00> : vector<16xf32>
    %8 = vector.multi_reduction <add>, %7, %cst_2 [1] : vector<16x128xf32> to vector<16xf32>
    %9 = vector.shape_cast %8 : vector<16xf32> to vector<16x1xf32>
    %cst_3 = arith.constant 7.812500e-03 : f32
    %10 = vector.broadcast %cst_3 : f32 to vector<16x1xf32>
    %11 = arith.mulf %9, %10 : vector<16x1xf32>
    %12 = math.sqrt %11 : vector<16x1xf32>
    %cst_4 = arith.constant 9.99999997E-7 : f32
    %13 = vector.broadcast %cst_4 : f32 to vector<16x1xf32>
    %14 = arith.addf %12, %13 : vector<16x1xf32>
    %15 = tpu.reciprocal %14 {approx = true} : vector<16x1xf32> -> vector<16x1xf32>
    %16 = vector.broadcast %15 : vector<16x1xf32> to vector<16x128xf32>
    %17 = arith.mulf %6, %16 : vector<16x128xf32>
    %18 = arith.truncf %17 : vector<16x128xf32> to vector<16x128xbf16>
    %c0_5 = arith.constant 0 : index
    %c0_6 = arith.constant 0 : index
    %19 = vector.load %arg3[%c0_5, %c0_6] : memref<128x128xbf16, #tpu.memory_space<vmem>>, vector<128x128xbf16>
    %cst_7 = arith.constant dense<0.000000e+00> : vector<16x128xf32>
    %20 = tpu.matmul %18, %19, %cst_7 {dimension_numbers = #tpu.dot_dimension_numbers<[1], [0], [0], [1], [0, 0, 1, 1], [], []>} : vector<16x128xbf16>, vector<128x128xbf16>, vector<16x128xf32> -> vector<16x128xf32>
    %c0_8 = arith.constant 0 : index
    %c0_9 = arith.constant 0 : index
    %21 = vector.load %arg4[%c0_8, %c0_9] : memref<1x128xf32, #tpu.memory_space<vmem>>, vector<1x128xf32>
    %22 = vector.broadcast %21 : vector<1x128xf32> to vector<16x128xf32>
    %23 = arith.addf %20, %22 : vector<16x128xf32>
    %c128_i32 = arith.constant 128 : i32
    %24 = arith.muli %arg1, %c128_i32 : i32
    %25 = tpu.assume_multiple %24, 128 : i32
    %c0_10 = arith.constant 0 : index
    %26 = arith.index_cast %25 : i32 to index
    %27 = vector.load %arg2[%c0_10, %26] : memref<16x128xf32, #tpu.memory_space<vmem>>, vector<16x128xf32>
    %28 = arith.addf %27, %23 : vector<16x128xf32>
    %c0_11 = arith.constant 0 : index
    %c0_12 = arith.constant 0 : index
    %29 = vector.load %arg5[%c0_11, %c0_12] : memref<16x128xf32, #tpu.memory_space<vmem>>, vector<16x128xf32>
    tpu.vector_store %arg5[%c0_11, %c0_12], %28 {strides = array<i32>} : memref<16x128xf32, #tpu.memory_space<vmem>>, vector<16x128xf32>,
    return
  }
  func.func @transform_0(%arg0: i32, %arg1: i32) -> (i32, i32) {
    %c0_i32 = arith.constant 0 : i32
    %c0_i32_0 = arith.constant 0 : i32
    return %arg0, %c0_i32 : i32, i32
  }
  func.func @transform_1(%arg0: i32, %arg1: i32) -> (i32, i32) {
    %c0_i32 = arith.constant 0 : i32
    %c0_i32_0 = arith.constant 0 : i32
    return %c0_i32, %arg1 : i32, i32
  }
  func.func @transform_2(%arg0: i32, %arg1: i32) -> (i32, i32) {
    %c0_i32 = arith.constant 0 : i32
    %c0_i32_0 = arith.constant 0 : i32
    return %c0_i32, %arg1 : i32, i32
  }
  func.func @transform_3(%arg0: i32, %arg1: i32) -> (i32, i32) {
    %c0_i32 = arith.constant 0 : i32
    return %arg0, %arg1 : i32, i32
  }
}

</mosaic_0001>

<llo_original>
// kernel: tpu_custom_call.1
$region0: #{tpu_custom_call.1}
  #allocation0 [shape = 'u32[]', space=smem, size = 0x4, offset = 0x4, fixed_abs, tag = 'smem constant byte address 0x4 - core index']
  #allocation1 [shape = 'u32[72,128]{1,0:T(1,128)}', space=vmem, size = 0x9000, scoped, tag = 'internal scratch']
  %s0 = inlined_call_operand.hbm [shape: f32[32,128], index: 0, kind: input, shape index: {}]
  %s1 = inlined_call_operand.hbm [shape: bf16[128,128], index: 1, kind: input, shape index: {}]
  %s2 = inlined_call_operand.vmem [shape: f32[1,128], index: 2, kind: input, shape index: {}]
  %s3 = inlined_call_operand.hbm [shape: f32[32,128], index: 3, kind: output, shape index: {}]
  %s4 = sld [smem:[#allocation0]]
  $region53: #{tpu_custom_call.1} parent=0
    _
  %s6 = ssub.s32 1, %s4
  %s7 = scalar_select 0, %s6, %s4
  $region1: #{tpu_custom_call.1} parent=0
    #allocation2 [shape = 'u8[16384]{0}', space=vmem, size = 0x4000, scoped, tag = 'input window, operand 0']
    #allocation3 [shape = 's32[2]{0}', space=sflag, size = 0x8, scoped, tag = 'scoped memory for tpu_custom_call.1']
    #allocation4 [shape = 's32[2]{0}', space=sflag, size = 0x8, scoped, tag = 'scoped memory for tpu_custom_call.1']
    #allocation5 [shape = 'u8[32768]{0}', space=vmem, size = 0x8000, scoped, tag = 'input window, operand 1, single buffered']
    #allocation6 [shape = 's32[1]{0}', space=sflag, size = 0x4, scoped, tag = 'scoped memory for tpu_custom_call.1']
    #allocation7 [shape = 'u8[16384]{0}', space=vmem, size = 0x4000, scoped, tag = 'output window, operand 0']
    %8 = vsyncpa [#allocation3], 0
    %s9 = scalar_lea.sflag [#allocation3], 1
    %10 = vsyncpa %s9, 0
    %11 = vsyncpa [#allocation6], 0
    %12 = vsyncpa [#allocation4], 0
    %s13 = scalar_lea.sflag [#allocation4], 1
    %14 = vsyncpa %s13, 0
    loop: start=0, step=1, limit=4
    $region2: #{tpu_custom_call.1} parent=1 // loop_pre_header
      _
    $region3: #{tpu_custom_call.1} parent=1 // loop_header
      %s16 = sphi 0, %s20
      %p17 = scmp.ge.s32.totalorder %s16, 4
      %s23 = sphi 0, %s35
      %s24 = sphi 0, %s31
      %s25 = sphi 0, %s23
      %s26 = sphi 0, %s24
      %s27 = sphi 0, %s25
      %s28 = sphi 0, %s26
      %s38 = sphi 0, %s40
      %s41 = sphi 0, %s38
      %s42 = sphi 0, %s41
      %s58 = sphi 0, %s42
      %s64 = sphi 0, %s66
      %s67 = sphi 0, %s64
      %s68 = sphi 0, %s67
      %s84 = sphi 0, %s68
      %s90 = sphi 0, %s92
      %s93 = sphi 0, %s90
      %s94 = sphi 0, %s93
      %s110 = sphi 0, %s94
      %s118 = sphi 0, %s120
      %s121 = sphi 0, %s118
      %s122 = sphi 0, %s121
      %s138 = sphi 0, %s122
    $region4: #{tpu_custom_call.1} parent=1 // loop_header_branch
      %19 = sbr.rel (%p17) target = $region8
    $region5: #{tpu_custom_call.1} parent=1 // loop_body
      %s21 = ssub.s32 %s16, 1
      %s22 = ssub.s32 %s16, 2
      %s29 = sadd.s32 1, %s24
      %p30 = scmp.ge.s32.totalorder %s29, 1
      %s31 = scalar_select %p30, 0, %s29
      %s32 = sadd.s32 1, %s23
      %s33 = scalar_select %p30, %s32, %s23
      %p34 = scmp.ge.s32.totalorder %s33, 2
      %s35 = scalar_select %p34, 0, %s33
      %s36 = ssub.s32 %s23, %s35
      %p37 = scmp.eq.s32.totalorder %s36, 0
      %s39 = sadd.s32 %s38, 1
      %s40 = scalar_select %p37, %s38, %s39
      %p43 = pneg %p37
      %p44 = scmp.eq.s32.totalorder %s16, 1
      %p45 = por %p43, %p44
      %p46 = scmp.ne.s32.totalorder %s38, %s41
      %p47 = scmp.eq.s32.totalorder %s16, 0
      %p48 = por %p46, %p47
      %p49 = scmp.ne.s32.totalorder %s38, %s41
      %p50 = scmp.eq.s32.totalorder %s21, 1
      %p51 = por %p49, %p50
      %p52 = scmp.ne.s32.totalorder %s41, %s42
      %p53 = scmp.eq.s32.totalorder %s21, 0
      %p54 = por %p52, %p53
      %p55 = scmp.ne.s32.totalorder %s41, %s42
      %p56 = scmp.eq.s32.totalorder %s22, 1
      %p57 = por %p55, %p56
      %p59 = scmp.ne.s32.totalorder %s42, %s58
      %p60 = scmp.eq.s32.totalorder %s22, 0
      %p61 = por %p59, %p60
      %s62 = ssub.s32 %s24, %s31
      %p63 = scmp.eq.s32.totalorder %s62, 0
      %s65 = sadd.s32 %s64, 1
      %s66 = scalar_select %p63, %s64, %s65
      %p69 = pneg %p63
      %p70 = scmp.eq.s32.totalorder %s16, 1
      %p71 = por %p69, %p70
      %p72 = scmp.ne.s32.totalorder %s64, %s67
      %p73 = scmp.eq.s32.totalorder %s16, 0
      %p74 = por %p72, %p73
      %p75 = scmp.ne.s32.totalorder %s64, %s67
      %p76 = scmp.eq.s32.totalorder %s21, 1
      %p77 = por %p75, %p76
      %p78 = scmp.ne.s32.totalorder %s67, %s68
      %p79 = scmp.eq.s32.totalorder %s21, 0
      %p80 = por %p78, %p79
      %p81 = scmp.ne.s32.totalorder %s67, %s68
      %p82 = scmp.eq.s32.totalorder %s22, 1
      %p83 = por %p81, %p82
      %p85 = scmp.ne.s32.totalorder %s68, %s84
      %p86 = scmp.eq.s32.totalorder %s22, 0
      %p87 = por %p85, %p86
      %s88 = ssub.s32 %s24, %s31
      %p89 = scmp.eq.s32.totalorder %s88, 0
      %s91 = sadd.s32 %s90, 1
      %s92 = scalar_select %p89, %s90, %s91
      %p95 = pneg %p89
      %p96 = scmp.eq.s32.totalorder %s16, 1
      %p97 = por %p95, %p96
      %p98 = scmp.ne.s32.totalorder %s90, %s93
      %p99 = scmp.eq.s32.totalorder %s16, 0
      %p100 = por %p98, %p99
      %p101 = scmp.ne.s32.totalorder %s90, %s93
      %p102 = scmp.eq.s32.totalorder %s21, 1
      %p103 = por %p101, %p102
      %p104 = scmp.ne.s32.totalorder %s93, %s94
      %p105 = scmp.eq.s32.totalorder %s21, 0
      %p106 = por %p104, %p105
      %p107 = scmp.ne.s32.totalorder %s93, %s94
      %p108 = scmp.eq.s32.totalorder %s22, 1
      %p109 = por %p107, %p108
      %p111 = scmp.ne.s32.totalorder %s94, %s110
      %p112 = scmp.eq.s32.totalorder %s22, 0
      %p113 = por %p111, %p112
      %s114 = ssub.s32 %s23, %s35
      %s115 = ssub.s32 %s24, %s31
      %s116 = sor.u32 %s114, %s115
      %p117 = scmp.eq.s32.totalorder %s116, 0
      %s119 = sadd.s32 %s118, 1
      %s120 = scalar_select %p117, %s118, %s119
      %p123 = pneg %p117
      %p124 = scmp.eq.s32.totalorder %s16, 1
      %p125 = por %p123, %p124
      %p126 = scmp.ne.s32.totalorder %s118, %s121
      %p127 = scmp.eq.s32.totalorder %s16, 0
      %p128 = por %p126, %p127
      %p129 = scmp.ne.s32.totalorder %s118, %s121
      %p130 = scmp.eq.s32.totalorder %s21, 1
      %p131 = por %p129, %p130
      %p132 = scmp.ne.s32.totalorder %s121, %s122
      %p133 = scmp.eq.s32.totalorder %s21, 0
      %p134 = por %p132, %p133
      %p135 = scmp.ne.s32.totalorder %s121, %s122
      %p136 = scmp.eq.s32.totalorder %s22, 1
      %p137 = por %p135, %p136
      %p139 = scmp.ne.s32.totalorder %s122, %s138
      %p140 = scmp.eq.s32.totalorder %s22, 0
      %p141 = por %p139, %p140
      %p142 = scmp.le.s32.totalorder 1, %s16
      %p143 = scmp.lt.s32.totalorder %s16, 3
      %p144 = pnand %p142, %p143
      %p145 = pneg %p144
      // Predicated region
      $region9: #{tpu_custom_call.1} parent=5 // pred_check
        _
      $region10: #{tpu_custom_call.1} parent=5 // pred_check_branch
        %147 = sbr.rel (%p144) target = $region12
      $region11: #{tpu_custom_call.1} parent=5 // pred_region
        %s148 = ssub.s32 %s16, 1
        // Predicated region
        $region13: #{tpu_custom_call.1} parent=11 // pred_check
          %p149 = pneg %p80
        $region14: #{tpu_custom_call.1} parent=11 // pred_check_branch
          %151 = sbr.rel (%p149) target = $region16
        $region15: #{tpu_custom_call.1} parent=11 // pred_region
          %153 = vsyncadd [#allocation6], 0
          %s154 = smul.addr %s26, 4
          %s155 = scalar_lea.hbm %s1, %s154
          %s156 = sshll.u32 %s155, 4
          %s157 = int_to_ptr.hbm [resolvable:$true] %s156
          %s158 = sshll.u32 [#allocation5], 4
          %s159 = int_to_ptr.vmem [resolvable:$true] %s158
          %164 = dma.hbm_to_vmem [thread:$0]  %s157, 1024, %s159, [#allocation6], 64, 64, 4
        $region16: #{tpu_custom_call.1} parent=11 // pred_fallthru
          _
        // Predicated region
        $region17: #{tpu_custom_call.1} parent=11 // pred_check
          %p165 = pneg %p106
        $region18: #{tpu_custom_call.1} parent=11 // pred_check_branch
          %167 = sbr.rel (%p165) target = $region20
        $region19: #{tpu_custom_call.1} parent=11 // pred_region
          %p168 = scmp.lt.s32.totalorder %s26, 0
          %s169 = scalar_select %p168, %s26, 0
          %s170 = scalar_lea.vmem %s2, %s169
        $region20: #{tpu_custom_call.1} parent=11 // pred_fallthru
          _
      $region12: #{tpu_custom_call.1} parent=5 // pred_fallthru
        _
      %p171 = scmp.lt.s32.totalorder %s16, 2
      // Predicated region
      $region21: #{tpu_custom_call.1} parent=5 // pred_check
        %p172 = pneg %p171
      $region22: #{tpu_custom_call.1} parent=5 // pred_check_branch
        %174 = sbr.rel (%p172) target = $region24
      $region23: #{tpu_custom_call.1} parent=5 // pred_region
        // Predicated region
        $region25: #{tpu_custom_call.1} parent=23 // pred_check
          %p175 = pneg %p48
        $region26: #{tpu_custom_call.1} parent=23 // pred_check_branch
          %177 = sbr.rel (%p175) target = $region28
        $region27: #{tpu_custom_call.1} parent=23 // pred_region
          %s178 = sand.u32 %s38, 1
          %s179 = scalar_lea.sflag [#allocation3], %s178
          %s180 = sand.u32 %s38, 1
          %s181 = smul.addr %s180, 16
          %s182 = scalar_lea.vmem [#allocation2], %s181
          %s183 = smul.u32 2, %s23
          %185 = vsyncadd %s179, 0
          %s186 = smul.addr %s183, 8
          %s187 = scalar_lea.hbm %s0, %s186
          %s188 = sshll.u32 %s187, 4
          %s189 = int_to_ptr.hbm [resolvable:$true] %s188
          %s190 = sshll.u32 %s182, 4
          %s191 = int_to_ptr.vmem [resolvable:$true] %s190
          %196 = dma.hbm_to_vmem [thread:$0]  %s189, 256, %s191, %s179, 128, 128, 8
        $region28: #{tpu_custom_call.1} parent=23 // pred_fallthru
          _
      $region24: #{tpu_custom_call.1} parent=5 // pred_fallthru
        _
      %p197 = scmp.le.s32.totalorder 1, %s16
      %p198 = scmp.lt.s32.totalorder %s16, 3
      %p199 = pnand %p197, %p198
      %p200 = pneg %p199
      // Predicated region
      $region29: #{tpu_custom_call.1} parent=5 // pred_check
        _
      $region30: #{tpu_custom_call.1} parent=5 // pred_check_branch
        %202 = sbr.rel (%p199) target = $region32
      $region31: #{tpu_custom_call.1} parent=5 // pred_region
        %s203 = ssub.s32 %s16, 1
        %s204 = sand.u32 %s41, 1
        %s205 = scalar_lea.sflag [#allocation3], %s204
        %s206 = sand.u32 %s41, 1
        %s207 = smul.addr %s206, 16
        %s208 = scalar_lea.vmem [#allocation2], %s207
        // Predicated region
        $region33: #{tpu_custom_call.1} parent=31 // pred_check
          %p209 = pneg %p54
        $region34: #{tpu_custom_call.1} parent=31 // pred_check_branch
          %211 = sbr.rel (%p209) target = $region36
        $region35: #{tpu_custom_call.1} parent=31 // pred_region
          %213 = dma.done %s205, 256
        $region36: #{tpu_custom_call.1} parent=31 // pred_fallthru
          _
        // Predicated region
        $region37: #{tpu_custom_call.1} parent=31 // pred_check
          %p214 = pneg %p80
        $region38: #{tpu_custom_call.1} parent=31 // pred_check_branch
          %216 = sbr.rel (%p214) target = $region40
        $region39: #{tpu_custom_call.1} parent=31 // pred_region
          %218 = dma.done [#allocation6], 1024
        $region40: #{tpu_custom_call.1} parent=31 // pred_fallthru
          _
        %s219 = sand.u32 %s41, 1
        %s220 = scalar_lea.sflag [#allocation3], %s219
        %s221 = sand.u32 %s41, 1
        %s222 = smul.addr %s221, 16
        %s223 = scalar_lea.vmem [#allocation2], %s222
        %p224 = pneg %p54
        %p225 = pneg %p51
        %p226 = pneg %p80
        %p227 = pneg %p77
        %p228 = scmp.lt.s32.totalorder %s26, 0
        %s229 = scalar_select %p228, %s26, 0
        %s230 = scalar_lea.vmem %s2, %s229
        %p231 = pneg %p106
        %p232 = pneg %p103
        %p233 = pneg %p134
        %p234 = pneg %p131
        %s235 = sand.u32 %s121, 1
        %s236 = scalar_lea.sflag [#allocation4], %s235
        %s237 = sand.u32 %s121, 1
        %s238 = smul.addr %s237, 16
        %s239 = scalar_lea.vmem [#allocation7], %s238
        %s240 = smul.u32 2, %s25
        %p241 = scmp.lt.s32.totalorder %s26, 0
        %s242 = scalar_select %p241, %s26, 0
        %s243 = scalar_lea.vmem %s2, %s242
        %s244 = smul.u32 2, %s25
        %v245 = vld [vmem:[%s208] sm:$0xff]
        %v246 = vld [vmem:[%s208 + $0x8] sm:$0xff]
        %247 = vadd.xlane.f32.xlu0 %v245
        %v248 = vpop.xlane.xlu0 %247
        %249 = vadd.xlane.f32.xlu0 %v246
        %v250 = vpop.xlane.xlu0 %249
        %v251 = vmul.f32 %v248, 0.0078125
        %v252 = vmul.f32 %v250, 0.0078125
        %v253 = vsub.f32 %v245, %v251
        %v254 = vsub.f32 %v246, %v252
        %v255 = vmul.f32 %v253, %v253
        %v256 = vmul.f32 %v254, %v254
        %257 = vadd.xlane.f32.xlu0 %v255
        %v258 = vpop.xlane.xlu0 %257
        %259 = vadd.xlane.f32.xlu0 %v256
        %v260 = vpop.xlane.xlu0 %259
        %v261 = vmul.f32 %v258, 0.0078125
        %v262 = vmul.f32 %v260, 0.0078125
        %v263 = vrsqrt.pop %v261
        %v264 = vmul.f32 %v263, %v261
        %v265 = vmul.f32 %v264, %v263
        %v266 = vmul.f32 0.5, %v265
        %v267 = vsub.f32 1.5, %v266
        %v268 = vmul.f32 %v263, %v267
        %v269 = vmul.f32 %v261, %v268
        %vm270 = vcmp.eq.f32.partialorder %v261, inf
        %v271 = vsel %vm270, %v261, %v269
        %vm272 = vcmp.eq.f32.partialorder %v261, 0.0
        %v273 = vand.u32 %v261, 2147483648
        %v274 = vsel %vm272, %v273, %v271
        %v275 = vrsqrt.pop %v262
        %v276 = vmul.f32 %v275, %v262
        %v277 = vmul.f32 %v276, %v275
        %v278 = vmul.f32 0.5, %v277
        %v279 = vsub.f32 1.5, %v278
        %v280 = vmul.f32 %v275, %v279
        %v281 = vmul.f32 %v262, %v280
        %vm282 = vcmp.eq.f32.partialorder %v262, inf
        %v283 = vsel %vm282, %v262, %v281
        %vm284 = vcmp.eq.f32.partialorder %v262, 0.0
        %v285 = vand.u32 %v262, 2147483648
        %v286 = vsel %vm284, %v285, %v283
        %v287 = vadd.f32 %v274, 1e-06
        %v288 = vadd.f32 %v286, 1e-06
        %v289 = vrcp.pop %v287
        %v290 = vrcp.pop %v288
        %v291 = vmul.f32 %v253, %v289
        %v292 = vmul.f32 %v254, %v290
        %v293 = vpack.c.bf16 %v292, %v291
        %v294 = vld [vmem:[#allocation5] sm:$0xf]
        %v295 = vld [vmem:[#allocation5 + $0x4] sm:$0xf]
        %v296 = vld [vmem:[#allocation5 + $0x8] sm:$0xf]
        %v297 = vld [vmem:[#allocation5 + $0xc] sm:$0xf]
        %v298 = vld [vmem:[#allocation5 + $0x10] sm:$0xf]
        %v299 = vld [vmem:[#allocation5 + $0x14] sm:$0xf]
        %v300 = vld [vmem:[#allocation5 + $0x18] sm:$0xf]
        %v301 = vld [vmem:[#allocation5 + $0x1c] sm:$0xf]
        %v302 = vld [vmem:[#allocation5 + $0x20] sm:$0xf]
        %v303 = vld [vmem:[#allocation5 + $0x24] sm:$0xf]
        %v304 = vld [vmem:[#allocation5 + $0x28] sm:$0xf]
        %v305 = vld [vmem:[#allocation5 + $0x2c] sm:$0xf]
        %v306 = vld [vmem:[#allocation5 + $0x30] sm:$0xf]
        %v307 = vld [vmem:[#allocation5 + $0x34] sm:$0xf]
        %v308 = vld [vmem:[#allocation5 + $0x38] sm:$0xf]
        %v309 = vld [vmem:[#allocation5 + $0x3c] sm:$0xf]
        %v310 = vld [vmem:[%s243] sm:$0x1]
        %v312 = vperm.slane %v310, 0
        %v330 = vunpack.c.l.b16 %v294
        %v331 = vunpack.c.l.b16 %v295
        %v332 = vunpack.c.l.b16 %v296
        %v333 = vunpack.c.l.b16 %v297
        %v334 = vunpack.c.l.b16 %v298
        %v335 = vunpack.c.l.b16 %v299
        %v336 = vunpack.c.l.b16 %v300
        %v337 = vunpack.c.l.b16 %v301
        %v338 = vunpack.c.l.b16 %v302
        %v339 = vunpack.c.l.b16 %v303
        %v340 = vunpack.c.l.b16 %v304
        %v341 = vunpack.c.l.b16 %v305
        %v342 = vunpack.c.l.b16 %v306
        %v343 = vunpack.c.l.b16 %v307
        %v344 = vunpack.c.l.b16 %v308
        %v345 = vunpack.c.l.b16 %v309
        %v346 = vpack.c.b16 %v331, %v330
        %v347 = vpack.c.b16 %v333, %v332
        %v348 = vpack.c.b16 %v335, %v334
        %v349 = vpack.c.b16 %v337, %v336
        %v350 = vpack.c.b16 %v339, %v338
        %v351 = vpack.c.b16 %v341, %v340
        %v352 = vpack.c.b16 %v343, %v342
        %v353 = vpack.c.b16 %v345, %v344
        %362 = vmatpush.bf16.msra.mxu0 %v353
        %363 = vmatpush.bf16.msra.mxu0 %v352
        %364 = vmatpush.bf16.msra.mxu0 %v351
        %365 = vmatpush.bf16.msra.mxu0 %v350
        %366 = vmatpush.bf16.msra.mxu0 %v349
        %367 = vmatpush.bf16.msra.mxu0 %v348
        %368 = vmatpush.bf16.msra.mxu0 %v347
        %369 = vmatpush.bf16.msra.mxu0 %v346
        %370 = vmatmul.bf16.gmra.mxu0 %v293
        %v371 = vpop.f32.mrf.mxu0
        %v372 = vadd.f32 %v312, %v371
        %v373 = vpop.f32.mrf.mxu0
        %v374 = vadd.f32 %v312, %v373
        %375 = vdwg.mxu0
        %s376 = smul.u32 %s26, 128
        %s377 = sshra.s32 %s376, 7
        %s378 = sand.u32 %s376, 127
        %s379 = scalar_lea.vmem %s208, %s377 [#allocation2]
        %v380 = vld [vmem:[%s379] sm:$0xff]
        %v381 = vld [vmem:[%s379 + $0x8] sm:$0xff]
        %v382 = vadd.f32 %v380, %v372
        %v383 = vadd.f32 %v381, %v374
        %384 = vst [vmem:[%s239] sm:$0xff] %v382
        %385 = vst [vmem:[%s239 + $0x8] sm:$0xff] %v383
        %s386 = sand.u32 %s121, 1
        %s387 = scalar_lea.sflag [#allocation4], %s386
        %s388 = sand.u32 %s121, 1
        %s389 = smul.addr %s388, 16
        %s390 = scalar_lea.vmem [#allocation7], %s389
        // Predicated region
        $region41: #{tpu_custom_call.1} parent=31 // pred_check
          %p391 = pneg %p131
        $region42: #{tpu_custom_call.1} parent=31 // pred_check_branch
          %393 = sbr.rel (%p391) target = $region44
        $region43: #{tpu_custom_call.1} parent=31 // pred_region
          %s394 = smul.u32 2, %s25
          %396 = vsyncadd %s387, 0
          %s397 = sadd.s32 %s26, %s394
          %s398 = smul.addr %s397, 8
          %s399 = scalar_lea.hbm %s3, %s398
          %s400 = sshll.u32 %s390, 4
          %s401 = int_to_ptr.vmem [resolvable:$true] %s400
          %s402 = sshll.u32 %s399, 4
          %s403 = int_to_ptr.hbm [resolvable:$true] %s402
          %408 = dma.vmem_to_hbm [thread:$0]  %s401, 256, %s403, %s387, 128, 128, 8
        $region44: #{tpu_custom_call.1} parent=31 // pred_fallthru
          _
      $region32: #{tpu_custom_call.1} parent=5 // pred_fallthru
        _
      %p409 = scmp.le.s32.totalorder 2, %s16
      // Predicated region
      $region45: #{tpu_custom_call.1} parent=5 // pred_check
        %p410 = pneg %p409
      $region46: #{tpu_custom_call.1} parent=5 // pred_check_branch
        %412 = sbr.rel (%p410) target = $region48
      $region47: #{tpu_custom_call.1} parent=5 // pred_region
        %s413 = ssub.s32 %s16, 2
        // Predicated region
        $region49: #{tpu_custom_call.1} parent=47 // pred_check
          %p414 = pneg %p137
        $region50: #{tpu_custom_call.1} parent=47 // pred_check_branch
          %416 = sbr.rel (%p414) target = $region52
        $region51: #{tpu_custom_call.1} parent=47 // pred_region
          %s417 = sand.u32 %s122, 1
          %s418 = scalar_lea.sflag [#allocation4], %s417
          %s419 = sand.u32 %s122, 1
          %s420 = smul.addr %s419, 16
          %s421 = scalar_lea.vmem [#allocation7], %s420
          %423 = dma.done %s418, 256
        $region52: #{tpu_custom_call.1} parent=47 // pred_fallthru
          _
      $region48: #{tpu_custom_call.1} parent=5 // pred_fallthru
        _
    $region6: #{tpu_custom_call.1} parent=1 // loop_footer
      %s20 = sadd.s32 1, %s16
    $region7: #{tpu_custom_call.1} parent=1 // loop_footer_branch
      %15 = sbr.rel target = $region3
    $region8: #{tpu_custom_call.1} parent=1 // loop_exit
      _
    %424 = vsyncpa [#allocation3], 1
    %s425 = scalar_lea.sflag [#allocation3], 1
    %426 = vsyncpa %s425, 1
    %427 = vsyncpa [#allocation6], 1
    %428 = vsyncpa [#allocation4], 1
    %s429 = scalar_lea.sflag [#allocation4], 1
    %430 = vsyncpa %s429, 1

</llo_original>
